<compile_context>
chip_gen: v5e
topology: v5e:2x2
jax: 0.10.0
libtpu: 0.0.40
codegen_flags: <defaults>
</compile_context>

<pallas_src>
import functools

import jax
import jax.numpy as jnp
from jax import lax
from jax.experimental import pallas as pl
from jax.experimental.pallas import tpu as pltpu


def _round_up(x, m):
    return ((x + m - 1) // m) * m


# ---------------------------------------------------------------------------
# Kernel 1: tiled streaming reduction over (B, D)
#   out[0] = sum |teacher - student|           (drives dynamic temperature)
#   out[1] = sum BCEWithLogits(student, y)     (un-normalized element sum)
# ---------------------------------------------------------------------------
def _partial_sums_kernel(s_ref, t_ref, y_ref, out_ref, acc_abs, acc_bce,
                         *, batch, tile_b, has_remainder):
    pid = pl.program_id(0)
    nprog = pl.num_programs(0)

    @pl.when(pid == 0)
    def _init():
        acc_abs[...] = jnp.zeros_like(acc_abs)
        acc_bce[...] = jnp.zeros_like(acc_bce)

    s = s_ref[...].astype(jnp.float32)
    t = t_ref[...].astype(jnp.float32)
    y = y_ref[...].astype(jnp.float32)

    groups = tile_b // 8
    d = s.shape[-1]

    def _accumulate(mask):
        a = jnp.abs(t - s)
        # BCEWithLogits, numerically stable: max(x,0) - x*y + log1p(exp(-|x|))
        bce = jnp.maximum(s, 0.0) - s * y + jnp.log1p(jnp.exp(-jnp.abs(s)))
        if mask is not None:
            # Select (not multiply) so garbage in the padded rows of a partial
            # block can never inject NaN/Inf into the accumulators.
            a = jnp.where(mask, a, 0.0)
            bce = jnp.where(mask, bce, 0.0)
        # Sublane-aligned partial reduce: (tile_b, D) -> (8, D) with pure VPU
        # vreg adds; the single cross-lane reduce happens in the finalize.
        acc_abs[...] += a.reshape(groups, 8, d).sum(axis=0)
        acc_bce[...] += bce.reshape(groups, 8, d).sum(axis=0)

    if has_remainder:
        is_last = pid == nprog - 1

        @pl.when(jnp.logical_not(is_last))
        def _interior():
            _accumulate(None)

        @pl.when(is_last)
        def _last():
            row = lax.broadcasted_iota(jnp.int32, s.shape, 0) + pid * tile_b
            _accumulate(row < batch)
    else:
        _accumulate(None)

    @pl.when(pid == nprog - 1)
    def _finalize():
        out_ref[0] = jnp.sum(acc_abs[...])
        out_ref[1] = jnp.sum(acc_bce[...])


# ---------------------------------------------------------------------------
# Kernel 2: NT-Xent contrastive loss (needs the full (2B, 2B) Gram matrix).
# ---------------------------------------------------------------------------
def _ntxent_kernel(inv_t2_ref, s_ref, t_ref, out_ref, f_ref, *, batch):
    inv_t2 = inv_t2_ref[0, 0]                                  # 1 / temperature^2

    s = s_ref[...].astype(jnp.float32)
    t = t_ref[...].astype(jnp.float32)

    # F.normalize(dim=-1): x / max(||x||, 1e-12)  ==  x * rsqrt(max(sumsq, 1e-24))
    sn = s * lax.rsqrt(jnp.maximum(jnp.sum(s * s, axis=-1, keepdims=True), 1e-24))
    tn = t * lax.rsqrt(jnp.maximum(jnp.sum(t * t, axis=-1, keepdims=True), 1e-24))

    # Positive logit for row i (and row i+B) is <sn_i, tn_i> / T^2; it is never
    # on the diagonal, so no (2B,2B) one-hot mask is needed.
    pos_sum = jnp.sum(sn * tn)

    # f = [sn; tn] written into one VMEM scratch (no concatenate temporary).
    f_ref[pl.ds(0, batch), :] = sn.astype(f_ref.dtype)
    f_ref[pl.ds(batch, batch), :] = tn.astype(f_ref.dtype)
    f = f_ref[...]

    # Gram matrix (contract last dims, no transpose copy); both divisions by T
    # are folded into a single multiply by inv_t2; diagonal zeroed via select.
    g = lax.dot_general(f, f, (((1,), (1,)), ((), ())),
                        preferred_element_type=jnp.float32)

    n2 = 2 * batch
    row = lax.broadcasted_iota(jnp.int32, (n2, n2), 0)
    col = lax.broadcasted_iota(jnp.int32, (n2, n2), 1)
    logits = jnp.where(row == col, 0.0, g * inv_t2)

    # Stable cross entropy: mean_i( logsumexp(logits_i) - pos_logit_i )
    m = jnp.max(logits, axis=-1, keepdims=True)
    lse = m + jnp.log(jnp.sum(jnp.exp(logits - m), axis=-1, keepdims=True))
    loss = (jnp.sum(lse) - 2.0 * inv_t2 * pos_sum) / jnp.float32(n2)

    out_ref[0, 0] = loss


# ---------------------------------------------------------------------------
# Wrapper
# ---------------------------------------------------------------------------
def distillation_ntxent_loss(student_logits, teacher_logits, true_labels,
                             *, alpha=0.5,
                             ntxent_base_temperature=0.07,
                             ntxent_min_temperature=0.01,
                             tile_b=None,
                             gram_dtype=jnp.float32):
    """Scalar loss, identical semantics to
    DistillationWithContrastiveNTXentAndDynamicTemperature.forward.

    Inputs may already be bf16 logits / int8 labels to cut HBM traffic (compute
    is f32 in-kernel).  `gram_dtype=jnp.bfloat16` switches the Gram matmul to
    the fast bf16 MXU path (small numeric drift vs the f32 reference).
    """
    assert student_logits.shape == teacher_logits.shape == true_labels.shape
    B, D = student_logits.shape
    n_elems = B * D

    in_itemsize = max(student_logits.dtype.itemsize,
                      teacher_logits.dtype.itemsize,
                      true_labels.dtype.itemsize)

    # ---------------- pass 1: tiled streaming reduction ----------------
    if tile_b is None:
        # VMEM budget: 3 inputs x 2 pipeline buffers x (tb, D) + two (8, D)
        # f32 accumulators, under ~16 MiB (safe on v5e/v6e/v7x scoped VMEM);
        # cap at the ~1024-row sweet spot of the HBM roofline.
        budget = 16 * 1024 * 1024
        per_row = 3 * 2 * D * in_itemsize
        tb = max(8, min((budget // per_row) // 8 * 8, 1024))
    else:
        tb = max(8, _round_up(int(tile_b), 8))
    tb = min(tb, _round_up(B, 8))
    # TODO(synk): add a D-tile for very large feature dims.

    grid1 = (pl.cdiv(B, tb),)
    has_remainder = (B % tb) != 0

    kernel1 = functools.partial(_partial_sums_kernel, batch=B, tile_b=tb,
                                has_remainder=has_remainder)

    sums = pl.pallas_call(
        kernel1,
        out_shape=jax.ShapeDtypeStruct((2,), jnp.float32),
        grid_spec=pltpu.PrefetchScalarGridSpec(
            num_scalar_prefetch=0,
            grid=grid1,
            in_specs=[
                pl.BlockSpec((tb, D), lambda i: (i, 0)),
                pl.BlockSpec((tb, D), lambda i: (i, 0)),
                pl.BlockSpec((tb, D), lambda i: (i, 0)),
            ],
            out_specs=pl.BlockSpec(memory_space=pltpu.SMEM),
            scratch_shapes=[pltpu.VMEM((8, D), jnp.float32),
                            pltpu.VMEM((8, D), jnp.float32)],
        ),
        compiler_params=pltpu.CompilerParams(
            dimension_semantics=("arbitrary",),
            vmem_limit_bytes=32 * 1024 * 1024),
        cost_estimate=pl.CostEstimate(
            flops=10 * B * D,
            transcendentals=2 * B * D,
            bytes_accessed=3 * B * D * in_itemsize + 8),
    )(student_logits, teacher_logits, true_labels)

    sum_abs, sum_bce = sums[0], sums[1]

    # Dynamic temperature (traced scalar replaces PyTorch's .item() host sync);
    # the two divisions by T in the reference are folded into one 1/T^2 scale.
    discrepancy = sum_abs / jnp.float32(n_elems)
    temperature = jnp.maximum(
        jnp.float32(ntxent_base_temperature) / (1.0 + discrepancy),
        jnp.float32(ntxent_min_temperature))
    inv_t2 = (1.0 / temperature) ** 2
    ce_loss = sum_bce / jnp.float32(n_elems)

    # ---------------- pass 2: NT-Xent contrastive loss ----------------
    inv_t2_arr = inv_t2.reshape(1, 1).astype(jnp.float32)
    kernel2 = functools.partial(_ntxent_kernel, batch=B)
    two_b = 2 * B

    ntxent = pl.pallas_call(
        kernel2,
        out_shape=jax.ShapeDtypeStruct((1, 1), jnp.float32),
        grid_spec=pltpu.PrefetchScalarGridSpec(
            num_scalar_prefetch=0,
            grid=(1,),
            in_specs=[
                pl.BlockSpec(memory_space=pltpu.SMEM),       # 1/T^2 scalar
                pl.BlockSpec((B, D), lambda i: (0, 0)),
                pl.BlockSpec((B, D), lambda i: (0, 0)),
            ],
            out_specs=pl.BlockSpec(memory_space=pltpu.SMEM),
            scratch_shapes=[pltpu.VMEM((two_b, D), gram_dtype)],
        ),
        compiler_params=pltpu.CompilerParams(
            dimension_semantics=("arbitrary",),
            vmem_limit_bytes=32 * 1024 * 1024),
        cost_estimate=pl.CostEstimate(
            flops=2 * two_b * two_b * D + 8 * two_b * two_b + 10 * B * D,
            transcendentals=two_b * two_b + 2 * B,
            bytes_accessed=(student_logits.dtype.itemsize
                            + teacher_logits.dtype.itemsize) * B * D + 8),
    )(inv_t2_arr, student_logits, teacher_logits)[0, 0]

    return alpha * ntxent + (1.0 - alpha) * ce_loss


# ---------------------------------------------------------------------------
# Pure-JAX reference (mirrors the PyTorch module)
# ---------------------------------------------------------------------------
def _reference(student_logits, teacher_logits, true_labels,
               alpha=0.5, base_temperature=0.07, min_temperature=0.01):
    s = student_logits.astype(jnp.float32)
    t = teacher_logits.astype(jnp.float32)
    y = true_labels.astype(jnp.float32)
    B = s.shape[0]

    disc = jnp.mean(jnp.abs(t - s))
    temp = jnp.maximum(base_temperature / (1.0 + disc), min_temperature)

    sn = s / jnp.maximum(jnp.linalg.norm(s, axis=-1, keepdims=True), 1e-12)
    tn = t / jnp.maximum(jnp.linalg.norm(t, axis=-1, keepdims=True), 1e-12)
    f = jnp.concatenate([sn, tn], axis=0)
    sim = jnp.matmul(f, f.T, precision="highest") / temp
    n2 = 2 * B
    mask = 1.0 - jnp.eye(n2, dtype=jnp.float32)
    logits = sim * mask / temp
    labels = jnp.concatenate([jnp.arange(B) + B, jnp.arange(B)])
    logp = jax.nn.log_softmax(logits, axis=-1)
    ntxent = -jnp.mean(logp[jnp.arange(n2), labels])

    bce = jnp.mean(jnp.maximum(s, 0.0) - s * y + jnp.log1p(jnp.exp(-jnp.abs(s))))
    return alpha * ntxent + (1.0 - alpha) * bce


if __name__ == "__main__":
    key = jax.random.PRNGKey(0)
    k1, k2, k3 = jax.random.split(key, 3)

    # Small shapes consistent with the module: batch=8, feature/label dim=128.
    B, D = 8, 128
    student_logits = jax.random.normal(k1, (B, D), dtype=jnp.float32)
    teacher_logits = jax.random.normal(k2, (B, D), dtype=jnp.float32)
    true_labels = (jax.random.uniform(k3, (B, D)) > 0.5).astype(jnp.float32)

    loss = jax.block_until_ready(
        distillation_ntxent_loss(student_logits, teacher_logits, true_labels,
                                 alpha=0.5))
    ref = _reference(student_logits, teacher_logits, true_labels, alpha=0.5)
    assert jnp.allclose(loss, ref, rtol=5e-3, atol=5e-3), (loss, ref)

    # Second config: multi-tile grid with a masked remainder tile (B=24, tb=16
    # -> grid of 2, last tile half out-of-bounds) to exercise the no-pad path.
    B2 = 24
    s2 = jax.random.normal(k1, (B2, D), dtype=jnp.float32)
    t2 = jax.random.normal(k2, (B2, D), dtype=jnp.float32)
    y2 = (jax.random.uniform(k3, (B2, D)) > 0.5).astype(jnp.float32)
    loss2 = jax.block_until_ready(
        distillation_ntxent_loss(s2, t2, y2, alpha=0.5, tile_b=16))
    ref2 = _reference(s2, t2, y2, alpha=0.5)
    assert jnp.allclose(loss2, ref2, rtol=5e-3, atol=5e-3), (loss2, ref2)

    print("KERNEL_OK")
</pallas_src>

<mosaic_0001>
module attributes {stable_mosaic.version = 11 : i64} {
  func.func @_partial_sums_kernel(%arg0: i32, %arg1: memref<8x128xf32, #tpu.memory_space<vmem>>, %arg2: memref<8x128xf32, #tpu.memory_space<vmem>>, %arg3: memref<8x128xf32, #tpu.memory_space<vmem>>, %arg4: memref<2xf32, #tpu.memory_space<smem>>, %arg5: memref<8x128xf32, #tpu.memory_space<vmem>>, %arg6: memref<8x128xf32, #tpu.memory_space<vmem>>) attributes {dimension_semantics = [#tpu.dimension_semantics<arbitrary>], iteration_bounds = array<i64: 1>, scalar_prefetch = 0 : i64, scratch_operands = 2 : i64, tpu.core_type = #tpu.core_type<tc>, window_params = [{transform_indices = @transform_0, window_bounds = array<i64: 8, 128>}, {transform_indices = @transform_1, window_bounds = array<i64: 8, 128>}, {transform_indices = @transform_2, window_bounds = array<i64: 8, 128>}, {transform_indices = @transform_3, window_bounds = array<i64: 2>}]} {
    %c0_i32 = arith.constant 0 : i32
    %0 = arith.cmpi eq, %arg0, %c0_i32 : i32
    %1 = arith.extui %0 : i1 to i32
    %c0_i32_0 = arith.constant 0 : i32
    %2 = arith.cmpi ne, %1, %c0_i32_0 : i32
    scf.if %2 {
      %cst_19 = arith.constant 0.000000e+00 : f32
      %31 = vector.broadcast %cst_19 : f32 to vector<8x128xf32>
      %c0_20 = arith.constant 0 : index
      %c0_21 = arith.constant 0 : index
      %32 = vector.load %arg5[%c0_20, %c0_21] : memref<8x128xf32, #tpu.memory_space<vmem>>, vector<8x128xf32>
      tpu.vector_store %arg5[%c0_20, %c0_21], %31 {strides = array<i32>} : memref<8x128xf32, #tpu.memory_space<vmem>>, vector<8x128xf32>,
      %cst_22 = arith.constant 0.000000e+00 : f32
      %33 = vector.broadcast %cst_22 : f32 to vector<8x128xf32>
      %c0_23 = arith.constant 0 : index
      %c0_24 = arith.constant 0 : index
      %34 = vector.load %arg6[%c0_23, %c0_24] : memref<8x128xf32, #tpu.memory_space<vmem>>, vector<8x128xf32>
      tpu.vector_store %arg6[%c0_23, %c0_24], %33 {strides = array<i32>} : memref<8x128xf32, #tpu.memory_space<vmem>>, vector<8x128xf32>,
    } else {
    }
    %c0 = arith.constant 0 : index
    %c0_1 = arith.constant 0 : index
    %3 = vector.load %arg1[%c0, %c0_1] : memref<8x128xf32, #tpu.memory_space<vmem>>, vector<8x128xf32>
    %c0_2 = arith.constant 0 : index
    %c0_3 = arith.constant 0 : index
    %4 = vector.load %arg2[%c0_2, %c0_3] : memref<8x128xf32, #tpu.memory_space<vmem>>, vector<8x128xf32>
    %c0_4 = arith.constant 0 : index
    %c0_5 = arith.constant 0 : index
    %5 = vector.load %arg3[%c0_4, %c0_5] : memref<8x128xf32, #tpu.memory_space<vmem>>, vector<8x128xf32>
    %6 = arith.subf %4, %3 : vector<8x128xf32>
    %7 = math.absf %6 : vector<8x128xf32>
    %cst = arith.constant 0.000000e+00 : f32
    %8 = vector.broadcast %cst : f32 to vector<8x128xf32>
    %9 = arith.maximumf %3, %8 : vector<8x128xf32>
    %10 = arith.mulf %3, %5 : vector<8x128xf32>
    %11 = arith.subf %9, %10 : vector<8x128xf32>
    %12 = math.absf %3 : vector<8x128xf32>
    %cst_6 = arith.constant 0.000000e+00 : f32
    %13 = vector.broadcast %cst_6 : f32 to vector<8x128xf32>
    %14 = arith.subf %13, %12 : vector<8x128xf32>
    %15 = math.exp %14 : vector<8x128xf32>
    %16 = math.log1p %15 : vector<8x128xf32>
    %17 = arith.addf %11, %16 : vector<8x128xf32>
    %c0_7 = arith.constant 0 : index
    %c0_8 = arith.constant 0 : index
    %18 = vector.load %arg5[%c0_7, %c0_8] : memref<8x128xf32, #tpu.memory_space<vmem>>, vector<8x128xf32>
    %19 = vector.shape_cast %7 : vector<8x128xf32> to vector<1x8x128xf32>
    %cst_9 = arith.constant dense<0.000000e+00> : vector<8x128xf32>
    %20 = vector.multi_reduction <add>, %19, %cst_9 [0] : vector<1x8x128xf32> to vector<8x128xf32>
    %21 = arith.addf %18, %20 : vector<8x128xf32>
    %c0_10 = arith.constant 0 : index
    %c0_11 = arith.constant 0 : index
    %22 = vector.load %arg5[%c0_10, %c0_11] : memref<8x128xf32, #tpu.memory_space<vmem>>, vector<8x128xf32>
    tpu.vector_store %arg5[%c0_10, %c0_11], %21 {strides = array<i32>} : memref<8x128xf32, #tpu.memory_space<vmem>>, vector<8x128xf32>,
    %c0_12 = arith.constant 0 : index
    %c0_13 = arith.constant 0 : index
    %23 = vector.load %arg6[%c0_12, %c0_13] : memref<8x128xf32, #tpu.memory_space<vmem>>, vector<8x128xf32>
    %24 = vector.shape_cast %17 : vector<8x128xf32> to vector<1x8x128xf32>
    %cst_14 = arith.constant dense<0.000000e+00> : vector<8x128xf32>
    %25 = vector.multi_reduction <add>, %24, %cst_14 [0] : vector<1x8x128xf32> to vector<8x128xf32>
    %26 = arith.addf %23, %25 : vector<8x128xf32>
    %c0_15 = arith.constant 0 : index
    %c0_16 = arith.constant 0 : index
    %27 = vector.load %arg6[%c0_15, %c0_16] : memref<8x128xf32, #tpu.memory_space<vmem>>, vector<8x128xf32>
    tpu.vector_store %arg6[%c0_15, %c0_16], %26 {strides = array<i32>} : memref<8x128xf32, #tpu.memory_space<vmem>>, vector<8x128xf32>,
    %c0_i32_17 = arith.constant 0 : i32
    %28 = arith.cmpi eq, %arg0, %c0_i32_17 : i32
    %29 = arith.extui %28 : i1 to i32
    %c0_i32_18 = arith.constant 0 : i32
    %30 = arith.cmpi ne, %29, %c0_i32_18 : i32
    scf.if %30 {
      %c0_19 = arith.constant 0 : index
      %c0_20 = arith.constant 0 : index
      %31 = vector.load %arg5[%c0_19, %c0_20] : memref<8x128xf32, #tpu.memory_space<vmem>>, vector<8x128xf32>
      %32 = vector.shape_cast %31 : vector<8x128xf32> to vector<1x8x128xf32>
      %cst_21 = arith.constant dense<0.000000e+00> : vector<1xf32>
      %33 = vector.multi_reduction <add>, %32, %cst_21 [1, 2] : vector<1x8x128xf32> to vector<1xf32>
      %34 = vector.shape_cast %33 : vector<1xf32> to vector<1x1x1xf32>
      %35 = vector.extract %34[0, 0, 0] : f32 from vector<1x1x1xf32>
      %c0_22 = arith.constant 0 : index
      %36 = memref.load %arg4[%c0_22] : memref<2xf32, #tpu.memory_space<smem>>
      memref.store %35, %arg4[%c0_22] : memref<2xf32, #tpu.memory_space<smem>>
      %c0_23 = arith.constant 0 : index
      %c0_24 = arith.constant 0 : index
      %37 = vector.load %arg6[%c0_23, %c0_24] : memref<8x128xf32, #tpu.memory_space<vmem>>, vector<8x128xf32>
      %38 = vector.shape_cast %37 : vector<8x128xf32> to vector<1x8x128xf32>
      %cst_25 = arith.constant dense<0.000000e+00> : vector<1xf32>
      %39 = vector.multi_reduction <add>, %38, %cst_25 [1, 2] : vector<1x8x128xf32> to vector<1xf32>
      %40 = vector.shape_cast %39 : vector<1xf32> to vector<1x1x1xf32>
      %41 = vector.extract %40[0, 0, 0] : f32 from vector<1x1x1xf32>
      %c1 = arith.constant 1 : index
      %42 = memref.load %arg4[%c1] : memref<2xf32, #tpu.memory_space<smem>>
      memref.store %41, %arg4[%c1] : memref<2xf32, #tpu.memory_space<smem>>
    } else {
    }
    return
  }
  func.func @transform_0(%arg0: i32) -> (i32, i32) {
    %c0_i32 = arith.constant 0 : i32
    %c0_i32_0 = arith.constant 0 : i32
    return %arg0, %c0_i32 : i32, i32
  }
  func.func @transform_1(%arg0: i32) -> (i32, i32) {
    %c0_i32 = arith.constant 0 : i32
    %c0_i32_0 = arith.constant 0 : i32
    return %arg0, %c0_i32 : i32, i32
  }
  func.func @transform_2(%arg0: i32) -> (i32, i32) {
    %c0_i32 = arith.constant 0 : i32
    %c0_i32_0 = arith.constant 0 : i32
    return %arg0, %c0_i32 : i32, i32
  }
  func.func @transform_3(%arg0: i32) -> i32 {
    %c0_i32 = arith.constant 0 : i32
    %c0_i32_0 = arith.constant 0 : i32
    return %c0_i32 : i32
  }
}

</mosaic_0001>

<llo_original>
// kernel: tpu_custom_call.1
$region0: #{tpu_custom_call.1}
  #allocation0 [shape = 'u32[]', space=smem, size = 0x4, offset = 0x4, fixed_abs, tag = 'smem constant byte address 0x4 - core index']
  #allocation1 [shape = 'u32[72,128]{1,0:T(1,128)}', space=vmem, size = 0x9000, scoped, tag = 'internal scratch']
  #allocation2 [shape = 'f32[8,128]{1,0:T(8,128)}', space=vmem, size = 0x1000, scoped, tag = 'scratch operand']
  #allocation3 [shape = 'f32[8,128]{1,0:T(8,128)}', space=vmem, size = 0x1000, scoped, tag = 'scratch operand']
  %s0 = inlined_call_operand.hbm [shape: f32[8,128], index: 0, kind: input, shape index: {}]
  %s1 = inlined_call_operand.hbm [shape: f32[8,128], index: 1, kind: input, shape index: {}]
  %s2 = inlined_call_operand.hbm [shape: f32[8,128], index: 2, kind: input, shape index: {}]
  %s3 = inlined_call_operand.hbm [shape: f32[2], index: 3, kind: output, shape index: {}]
  %s4 = sld [smem:[#allocation0]]
  $region42: #{tpu_custom_call.1} parent=0
    _
  %s6 = ssub.s32 1, %s4
  %s7 = scalar_select 0, %s6, %s4
  $region1: #{tpu_custom_call.1} parent=0
    #allocation4 [shape = 'u8[4096]{0}', space=vmem, size = 0x1000, scoped, tag = 'input window, operand 0, single buffered']
    #allocation5 [shape = 's32[1]{0}', space=sflag, size = 0x4, scoped, tag = 'scoped memory for tpu_custom_call.1']
    #allocation6 [shape = 's32[1]{0}', space=sflag, size = 0x4, scoped, tag = 'scoped memory for tpu_custom_call.1']
    #allocation7 [shape = 'u8[4096]{0}', space=vmem, size = 0x1000, scoped, tag = 'input window, operand 1, single buffered']
    #allocation8 [shape = 's32[1]{0}', space=sflag, size = 0x4, scoped, tag = 'scoped memory for tpu_custom_call.1']
    #allocation9 [shape = 'u8[4096]{0}', space=vmem, size = 0x1000, scoped, tag = 'input window, operand 2, single buffered']
    #allocation10 [shape = 'u8[512]{0}', space=smem, size = 0x200, scoped, tag = 'output window, operand 0, single buffered']
    %8 = vsyncpa [#allocation5], 0
    %9 = vsyncpa [#allocation8], 0
    %10 = vsyncpa [#allocation6], 0
    // Predicated region
    $region2: #{tpu_custom_call.1} parent=1 // pred_check
      _
    $region3: #{tpu_custom_call.1} parent=1 // pred_check_branch
      %12 = sbr.rel (0) target = $region5
    $region4: #{tpu_custom_call.1} parent=1 // pred_region
      %14 = vsyncadd [#allocation5], 0
      %s16 = sshll.u32 %s0, 4
      %s17 = int_to_ptr.hbm [resolvable:$true] %s16
      %s18 = sshll.u32 [#allocation4], 4
      %s19 = int_to_ptr.vmem [resolvable:$true] %s18
      %21 = dma.hbm_to_vmem [thread:$0]  %s17, 128, %s19, [#allocation5]
    $region5: #{tpu_custom_call.1} parent=1 // pred_fallthru
      _
    // Predicated region
    $region6: #{tpu_custom_call.1} parent=1 // pred_check
      _
    $region7: #{tpu_custom_call.1} parent=1 // pred_check_branch
      %23 = sbr.rel (0) target = $region9
    $region8: #{tpu_custom_call.1} parent=1 // pred_region
      %25 = vsyncadd [#allocation8], 0
      %s27 = sshll.u32 %s1, 4
      %s28 = int_to_ptr.hbm [resolvable:$true] %s27
      %s29 = sshll.u32 [#allocation7], 4
      %s30 = int_to_ptr.vmem [resolvable:$true] %s29
      %32 = dma.hbm_to_vmem [thread:$0]  %s28, 128, %s30, [#allocation8]
    $region9: #{tpu_custom_call.1} parent=1 // pred_fallthru
      _
    // Predicated region
    $region10: #{tpu_custom_call.1} parent=1 // pred_check
      _
    $region11: #{tpu_custom_call.1} parent=1 // pred_check_branch
      %34 = sbr.rel (0) target = $region13
    $region12: #{tpu_custom_call.1} parent=1 // pred_region
      %36 = vsyncadd [#allocation8], 0
      %s38 = sshll.u32 %s2, 4
      %s39 = int_to_ptr.hbm [resolvable:$true] %s38
      %s40 = sshll.u32 [#allocation9], 4
      %s41 = int_to_ptr.vmem [resolvable:$true] %s40
      %43 = dma.hbm_to_vmem [thread:$0]  %s39, 128, %s41, [#allocation8]
    $region13: #{tpu_custom_call.1} parent=1 // pred_fallthru
      _
    // Predicated region
    $region14: #{tpu_custom_call.1} parent=1 // pred_check
      _
    $region15: #{tpu_custom_call.1} parent=1 // pred_check_branch
      %45 = sbr.rel (0) target = $region17
    $region16: #{tpu_custom_call.1} parent=1 // pred_region
      %47 = dma.done [#allocation5], 128
    $region17: #{tpu_custom_call.1} parent=1 // pred_fallthru
      _
    // Predicated region
    $region18: #{tpu_custom_call.1} parent=1 // pred_check
      _
    $region19: #{tpu_custom_call.1} parent=1 // pred_check_branch
      %49 = sbr.rel (0) target = $region21
    $region20: #{tpu_custom_call.1} parent=1 // pred_region
      %51 = dma.done [#allocation8], 128
    $region21: #{tpu_custom_call.1} parent=1 // pred_fallthru
      _
    // Predicated region
    $region22: #{tpu_custom_call.1} parent=1 // pred_check
      _
    $region23: #{tpu_custom_call.1} parent=1 // pred_check_branch
      %53 = sbr.rel (0) target = $region25
    $region24: #{tpu_custom_call.1} parent=1 // pred_region
      %55 = dma.done [#allocation8], 128
    $region25: #{tpu_custom_call.1} parent=1 // pred_fallthru
      _
    %p56 = scmp.eq.s32.totalorder 0, 0
    // Predicated region
    $region26: #{tpu_custom_call.1} parent=1 // pred_check
      %p57 = pneg %p56
    $region27: #{tpu_custom_call.1} parent=1 // pred_check_branch
      %59 = sbr.rel (%p57) target = $region29
    $region28: #{tpu_custom_call.1} parent=1 // pred_region
      %60 = vst [vmem:[#allocation2] sm:$0xff] 0.0
      %61 = vst [vmem:[#allocation3] sm:$0xff] 0.0
    $region29: #{tpu_custom_call.1} parent=1 // pred_fallthru
      _
    %v62 = vld [vmem:[#allocation4] sm:$0xff]
    %v63 = vld [vmem:[#allocation7] sm:$0xff]
    %v64 = vld [vmem:[#allocation9] sm:$0xff]
    %v65 = vsub.f32 %v63, %v62
    %v66 = vand.u32 2147483647, %v65
    %v67 = vmax.f32 %v62, 0.0
    %v68 = vmul.f32 %v62, %v64
    %v69 = vsub.f32 %v67, %v68
    %v70 = vand.u32 2147483647, %v62
    %v71 = vsub.f32 0.0, %v70
    %v72 = vmul.f32 %v71, 1.442695
    %v73 = vpow.pop %v72
    %v74 = vadd.f32 %v73, 1.0
    %v75 = vlog2.pop %v74
    %v76 = vmul.f32 %v75, 0.6931472
    %v77 = vmul.f32 -0.5, %v73
    %v78 = vadd.f32 %v77, 1.0
    %v79 = vmul.f32 %v78, %v73
    %v80 = vand.u32 2147483647, %v73
    %vm81 = vcmp.lt.f32.partialorder %v80, 0.0004427343
    %v82 = vsel %vm81, %v79, %v76
    %v83 = vadd.f32 %v69, %v82
    %v84 = vld [vmem:[#allocation2] sm:$0xff]
    %v85 = vadd.f32 %v66, 0.0
    %v86 = vadd.f32 %v84, %v85
    %87 = vst [vmem:[#allocation2] sm:$0xff] %v86
    %v88 = vld [vmem:[#allocation3] sm:$0xff]
    %v89 = vadd.f32 %v83, 0.0
    %v90 = vadd.f32 %v88, %v89
    %91 = vst [vmem:[#allocation3] sm:$0xff] %v90
    // Predicated region
    $region30: #{tpu_custom_call.1} parent=1 // pred_check
      %p92 = pneg %p56
    $region31: #{tpu_custom_call.1} parent=1 // pred_check_branch
      %94 = sbr.rel (%p92) target = $region33
    $region32: #{tpu_custom_call.1} parent=1 // pred_region
      %v95 = vld [vmem:[#allocation2] sm:$0xff]
      %96 = vadd.xlane.f32.xlu0 %v95
      %v97 = vpop.xlane.xlu0 %96
      %v98 = vrot.slane %v97, 4
      %v99 = vadd.f32 %v97, %v98
      %v100 = vrot.slane %v99, 2
      %v101 = vadd.f32 %v99, %v100
      %v102 = vrot.slane %v101, 1
      %v103 = vadd.f32 %v101, %v102
      %s104 = vtos %v103
      %s105 = scalar_lea.smem [#allocation10], 0
      %106 = sst [smem:[%s105]] %s104
      %v107 = vld [vmem:[#allocation3] sm:$0xff]
      %108 = vadd.xlane.f32.xlu0 %v107
      %v109 = vpop.xlane.xlu0 %108
      %v110 = vrot.slane %v109, 4
      %v111 = vadd.f32 %v109, %v110
      %v112 = vrot.slane %v111, 2
      %v113 = vadd.f32 %v111, %v112
      %v114 = vrot.slane %v113, 1
      %v115 = vadd.f32 %v113, %v114
      %s116 = vtos %v115
      %s117 = scalar_lea.smem [#allocation10], 1
      %118 = sst [smem:[%s117]] %s116
    $region33: #{tpu_custom_call.1} parent=1 // pred_fallthru
      _
    // Predicated region
    $region34: #{tpu_custom_call.1} parent=1 // pred_check
      _
    $region35: #{tpu_custom_call.1} parent=1 // pred_check_branch
      %120 = sbr.rel (0) target = $region37
    $region36: #{tpu_custom_call.1} parent=1 // pred_region
      %122 = vsyncadd [#allocation6], 0
      %s124 = sshll.u32 %s3, 4
      %s125 = int_to_ptr.hbm [resolvable:$true] %s124
      %127 = dma.smem_to_hbm [#allocation10], 16, %s125, [#allocation6]
    $region37: #{tpu_custom_call.1} parent=1 // pred_fallthru
      _
    // Predicated region
    $region38: #{tpu_custom_call.1} parent=1 // pred_check
      _
    $region39: #{tpu_custom_call.1} parent=1 // pred_check_branch
      %129 = sbr.rel (0) target = $region41
    $region40: #{tpu_custom_call.1} parent=1 // pred_region
      %131 = dma.done [#allocation6], 16
    $region41: #{tpu_custom_call.1} parent=1 // pred_fallthru
      _
    %132 = sfence
    %133 = vsyncpa [#allocation5], 1
    %134 = vsyncpa [#allocation8], 1
    %135 = vsyncpa [#allocation6], 1

</llo_original>
